<compile_context>
chip_gen: v6e
topology: v6e:2x2x1
jax: 0.10.0
libtpu: 0.0.40
codegen_flags: <defaults>
</compile_context>

<pallas_src>
import functools

import jax
import jax.numpy as jnp
from jax.experimental import pallas as pl
from jax.experimental.pallas import tpu as pltpu

_MiB = 1024 * 1024


def _round_up(x, m):
    return (x + m - 1) // m * m


# ---------------------------------------------------------------------------
# Generation detection / defaults
# ---------------------------------------------------------------------------

@functools.lru_cache(maxsize=1)
def _tpu_plan_defaults():
    """Returns (gen, vmem_capacity_bytes, default_tm, default_th, bf16_vpu)."""
    kind = ""
    try:
        kind = jax.devices()[0].device_kind.lower()
    except Exception:
        pass

    vmem_cap = None
    try:
        vmem_cap = int(pltpu.get_tpu_info().vmem_capacity_bytes)
    except Exception:
        vmem_cap = None

    if "v7" in kind:
        gen = "v7x"
    elif "v6" in kind:
        gen = "v6e"
    elif "v5" in kind and ("lite" in kind or "v5e" in kind):
        gen = "v5e"
    else:
        gen = "other"

    if vmem_cap is None:
        vmem_cap = 64 * _MiB if gen == "v7x" else 128 * _MiB

    if gen == "v5e":
        tm, th, bf16_vpu = 256, 512, False   # already roofline-balanced; f32 VPU only
    elif gen == "v6e":
        tm, th, bf16_vpu = 1024, 512, True   # needs big tm to leave HBM roofline
    elif gen == "v7x":
        tm, th, bf16_vpu = 512, 256, True    # 64 MiB/TC: smaller th, bf16 everywhere
    else:
        tm, th, bf16_vpu = 512, 256, True
    return gen, vmem_cap, tm, th, bf16_vpu


# ---------------------------------------------------------------------------
# VMEM footprint estimates (double-buffered operands counted at 2x)
# ---------------------------------------------------------------------------

def _est_tiled_vmem(tm, th, dim, act_isz, w_isz, out_isz, epi_isz):
    return (2 * tm * dim * act_isz        # x tiles
            + 2 * dim * th * w_isz        # W1 tiles
            + 2 * 8 * th * epi_isz        # b1 tiles (sublane-padded)
            + 2 * th * dim * w_isz        # W2 tiles
            + 2 * 8 * dim * 4             # b2
            + 2 * tm * dim * out_isz      # out tiles
            + tm * dim * 4                # f32 accumulator scratch
            + 2 * tm * th * epi_isz)      # (tm, th) intermediate + headroom


def _est_resident_vmem(tm, hidden, dim, act_isz, w_isz, out_isz, epi_isz):
    return (2 * tm * dim * act_isz
            + 2 * dim * hidden * w_isz    # full W1 (conservatively 2 buffers)
            + 2 * 8 * hidden * epi_isz
            + 2 * hidden * dim * w_isz    # full W2
            + 2 * 8 * dim * 4
            + 2 * tm * dim * out_isz
            + 2 * tm * hidden * epi_isz)  # (tm, hidden) intermediate + headroom


# ---------------------------------------------------------------------------
# Kernels
# ---------------------------------------------------------------------------

def _ffn_resident_kernel(x_ref, w1_ref, b1_ref, w2_ref, b2_ref, o_ref, *,
                         epilogue_dtype):
    # x/W1/W2 are already in the MXU compute dtype (cast once in the wrapper).
    h = jnp.dot(x_ref[...], w1_ref[...], preferred_element_type=epilogue_dtype)
    h = jnp.maximum(h + b1_ref[...], 0)          # bias + ReLU in epilogue dtype
    # Dropout(p=0.1): identity in eval mode.
    y = jnp.dot(h.astype(w2_ref.dtype), w2_ref[...],
                preferred_element_type=jnp.float32)
    o_ref[...] = (y + b2_ref[...]).astype(o_ref.dtype)


def _ffn_tiled_kernel(x_ref, w1_ref, b1_ref, w2_ref, b2_ref, o_ref, acc_ref, *,
                      epilogue_dtype):
    j = pl.program_id(1)  # hidden-axis step ("arbitrary" reduction axis)

    # Fold the second-layer bias into the accumulator init.
    @pl.when(j == 0)
    def _():
        acc_ref[...] = jnp.broadcast_to(b2_ref[...], acc_ref.shape)

    h = jnp.dot(x_ref[...], w1_ref[...], preferred_element_type=epilogue_dtype)
    h = jnp.maximum(h + b1_ref[...], 0)          # bias + ReLU
    # Dropout(p=0.1): identity in eval mode.
    acc_ref[...] += jnp.dot(h.astype(w2_ref.dtype), w2_ref[...],
                            preferred_element_type=jnp.float32)

    @pl.when(j == pl.num_programs(1) - 1)
    def _():
        o_ref[...] = acc_ref[...].astype(o_ref.dtype)


# ---------------------------------------------------------------------------
# Planner (all static, runs at Python level)
# ---------------------------------------------------------------------------

def _plan(N, dim, hidden, x_dtype, tm, th, compute_dtype, weight_resident):
    gen, vmem_cap, d_tm, d_th, bf16_vpu = _tpu_plan_defaults()
    tm = d_tm if tm is None else tm
    th = d_th if th is None else th
    compute_dtype = jnp.dtype(jnp.bfloat16 if compute_dtype is None
                              else compute_dtype)
    if compute_dtype == jnp.dtype(jnp.bfloat16) and bf16_vpu:
        epilogue_dtype = jnp.dtype(jnp.bfloat16)   # bf16 VPU: bf16 bias/ReLU
    else:
        epilogue_dtype = jnp.dtype(jnp.float32)

    budget = int(0.85 * vmem_cap)                  # generation-aware VMEM limit
    act_isz = compute_dtype.itemsize
    w_isz = compute_dtype.itemsize
    out_isz = jnp.dtype(x_dtype).itemsize
    epi_isz = epilogue_dtype.itemsize

    # ---- hidden tile: largest multiple of 128 <= th that divides hidden;
    # otherwise keep the aligned th and let the impl zero-pad hidden.
    th_eff = max(min(_round_up(th, 128), _round_up(hidden, 128)), 128)
    t = th_eff
    while t >= 128:
        if hidden % t == 0:
            th_eff = t
            break
        t -= 128

    # ---- row tile ----
    n8 = _round_up(N, 8)
    tm_eff = min(_round_up(tm, 8), n8)
    if gen == "v7x" and n8 > 256:
        # keep >= 2 row tiles so the "parallel" axis can feed both TensorCores
        tm_eff = min(tm_eff, max(_round_up(-(-n8 // 2), 8), 128))

    def est_res(t_m):
        return _est_resident_vmem(t_m, hidden, dim, act_isz, w_isz, out_isz,
                                  epi_isz)

    def est_tile(t_m, t_h):
        return _est_tiled_vmem(t_m, t_h, dim, act_isz, w_isz, out_isz, epi_isz)

    # ---- weight-resident fast path? ----
    if weight_resident is None:
        resident = est_res(min(tm_eff, 256)) <= budget
    else:
        resident = bool(weight_resident)

    if resident:
        while tm_eff > 128 and est_res(tm_eff) > budget:
            tm_eff = _round_up(tm_eff // 2, 8)
        if est_res(tm_eff) > budget and weight_resident is None:
            resident = False                       # fall back to tiled path

    if not resident:
        while tm_eff > 128 and est_tile(tm_eff, th_eff) > budget:
            tm_eff = _round_up(tm_eff // 2, 8)
        while th_eff > 128 and est_tile(tm_eff, th_eff) > budget:
            th_eff = max(_round_up(th_eff // 2, 128), 128)

    # ---- snap tm to a divisor of N (avoids the pad/slice HBM passes) ----
    if N % tm_eff != 0 and N % 8 == 0:
        lo = max(tm_eff // 2, 8)
        t = tm_eff
        while t >= lo:
            if N % t == 0:
                tm_eff = t
                break
            t -= 8

    vmem_limit = int(min(max(budget, 32 * _MiB), vmem_cap))

    return dict(tm=int(tm_eff), th=int(th_eff), resident=bool(resident),
                compute_dtype=compute_dtype, epilogue_dtype=epilogue_dtype,
                vmem_limit=vmem_limit)


# ---------------------------------------------------------------------------
# pallas_call wrapper
# ---------------------------------------------------------------------------

@functools.partial(
    jax.jit,
    static_argnames=("tm", "th", "resident", "compute_dtype",
                     "epilogue_dtype", "vmem_limit"))
def _feed_forward_impl(x, w1, b1, w2, b2, *, tm, th, resident,
                       compute_dtype, epilogue_dtype, vmem_limit):
    B, S, dim = x.shape
    hidden = w1.shape[1]
    N = B * S
    n_pad = _round_up(N, tm)

    # Cast activations to the MXU compute dtype once (no per-step recast in the
    # kernel).  If x is already in compute_dtype this is a no-op.
    xf = x.reshape(N, dim).astype(compute_dtype)
    if n_pad != N:
        xf = jnp.pad(xf, ((0, n_pad - N), (0, 0)))

    # No-ops when weights were pre-cast by the caller (recommended).
    w1c = w1.astype(compute_dtype)
    w2c = w2.astype(compute_dtype)
    b1r = b1.reshape(1, hidden).astype(epilogue_dtype)
    b2r = b2.reshape(1, dim).astype(jnp.float32)

    if resident:
        grid = (n_pad // tm,)
        kernel = functools.partial(_ffn_resident_kernel,
                                   epilogue_dtype=epilogue_dtype)
        in_specs = [
            pl.BlockSpec((tm, dim), lambda i: (i, 0)),        # x rows
            pl.BlockSpec((dim, hidden), lambda i: (0, 0)),    # W1, resident
            pl.BlockSpec((1, hidden), lambda i: (0, 0)),      # b1, resident
            pl.BlockSpec((hidden, dim), lambda i: (0, 0)),    # W2, resident
            pl.BlockSpec((1, dim), lambda i: (0, 0)),         # b2
        ]
        out_specs = pl.BlockSpec((tm, dim), lambda i: (i, 0))
        scratch_shapes = []
        dim_sem = ("parallel",)
    else:
        hidden_pad = _round_up(hidden, th)
        if hidden_pad != hidden:
            # Zero-pad the hidden axis: padded W1 cols / b1 entries / W2 rows
            # are zero, so they contribute nothing to the output.
            w1c = jnp.pad(w1c, ((0, 0), (0, hidden_pad - hidden)))
            b1r = jnp.pad(b1r, ((0, 0), (0, hidden_pad - hidden)))
            w2c = jnp.pad(w2c, ((0, hidden_pad - hidden), (0, 0)))
        grid = (n_pad // tm, hidden_pad // th)
        kernel = functools.partial(_ffn_tiled_kernel,
                                   epilogue_dtype=epilogue_dtype)
        in_specs = [
            pl.BlockSpec((tm, dim), lambda i, j: (i, 0)),     # x rows
            pl.BlockSpec((dim, th), lambda i, j: (0, j)),     # W1 cols
            pl.BlockSpec((1, th), lambda i, j: (0, j)),       # b1 slice
            pl.BlockSpec((th, dim), lambda i, j: (j, 0)),     # W2 rows
            pl.BlockSpec((1, dim), lambda i, j: (0, 0)),      # b2
        ]
        out_specs = pl.BlockSpec((tm, dim), lambda i, j: (i, 0))
        scratch_shapes = [pltpu.VMEM((tm, dim), jnp.float32)]
        dim_sem = ("parallel", "arbitrary")

    out = pl.pallas_call(
        kernel,
        out_shape=jax.ShapeDtypeStruct((n_pad, dim), x.dtype),
        grid_spec=pltpu.PrefetchScalarGridSpec(
            num_scalar_prefetch=0,
            grid=grid,
            in_specs=in_specs,
            out_specs=out_specs,
            scratch_shapes=scratch_shapes),
        compiler_params=pltpu.CompilerParams(
            dimension_semantics=dim_sem,
            vmem_limit_bytes=vmem_limit),
    )(xf, w1c, b1r, w2c, b2r)

    return out[:N].reshape(B, S, dim)


def feed_forward(x, w1, b1, w2, b2, *, tm=None, th=None, compute_dtype=None,
                 weight_resident=None):
    """Eval-mode FeedForward: Linear(dim,4dim) -> ReLU -> Dropout(id) -> Linear(4dim,dim).

    x: (B, S, dim); w1: (dim, 4*dim); b1: (4*dim,); w2: (4*dim, dim); b2: (dim,).
    Pass weights pre-cast to bfloat16 to hoist the per-call cast out of the hot
    path (the in-jit astype is then a no-op).
    """
    B, S, dim = x.shape
    hidden = w1.shape[1]
    plan = _plan(B * S, dim, hidden, x.dtype, tm, th, compute_dtype,
                 weight_resident)
    return _feed_forward_impl(x, w1, b1, w2, b2, **plan)


def init_params(key, dim):
    """Deterministic init matching nn.Linear's default (uniform +-1/sqrt(fan_in))."""
    hidden = dim * 4
    k1, k2, k3, k4 = jax.random.split(key, 4)
    bound1 = 1.0 / jnp.sqrt(dim)
    bound2 = 1.0 / jnp.sqrt(hidden)
    # stored as (in_features, out_features) = transpose of PyTorch's weight
    w1 = jax.random.uniform(k1, (dim, hidden), jnp.float32, -bound1, bound1)
    b1 = jax.random.uniform(k2, (hidden,), jnp.float32, -bound1, bound1)
    w2 = jax.random.uniform(k3, (hidden, dim), jnp.float32, -bound2, bound2)
    b2 = jax.random.uniform(k4, (dim,), jnp.float32, -bound2, bound2)
    return w1, b1, w2, b2


if __name__ == "__main__":
    key = jax.random.PRNGKey(0)
    B, S, dim = 2, 8, 128  # dim % 128 == 0 -> lane-dense output stores

    kx, kp = jax.random.split(key)
    x = jax.random.normal(kx, (B, S, dim), jnp.float32)
    w1, b1, w2, b2 = init_params(kp, dim)

    # plain-JAX reference (eval-mode FeedForward)
    ref = (jnp.maximum(x.reshape(-1, dim) @ w1 + b1, 0.0) @ w2 + b2)
    ref = ref.reshape(B, S, dim)

    # 1) f32 compute, forced hidden-tiled reduction path (exercises the
    #    accumulator init / accumulate / finalize) -- tight tolerance.
    y32t = feed_forward(x, w1, b1, w2, b2, th=128, compute_dtype=jnp.float32,
                        weight_resident=False)
    jax.block_until_ready(y32t)
    assert y32t.shape == (B, S, dim)
    assert jnp.allclose(y32t, ref, atol=2e-4, rtol=2e-4), "f32 tiled mismatch"

    # 2) f32 compute, forced weight-resident fast path -- tight tolerance.
    y32r = feed_forward(x, w1, b1, w2, b2, compute_dtype=jnp.float32,
                        weight_resident=True)
    jax.block_until_ready(y32r)
    assert y32r.shape == (B, S, dim)
    assert jnp.allclose(y32r, ref, atol=2e-4, rtol=2e-4), "f32 resident mismatch"

    # 3) Default performance path: bf16 MXU operands (weights pre-cast once,
    #    hoisting the per-call cast), auto path selection, f32 accumulation.
    w1_bf = w1.astype(jnp.bfloat16)
    w2_bf = w2.astype(jnp.bfloat16)
    y16 = feed_forward(x, w1_bf, b1, w2_bf, b2)
    jax.block_until_ready(y16)
    assert y16.shape == (B, S, dim)
    assert jnp.allclose(y16, ref, atol=5e-2, rtol=5e-2), "bf16 mismatch"

    print("KERNEL_OK")
</pallas_src>

<mosaic_0001>
module attributes {stable_mosaic.version = 11 : i64} {
  func.func @_ffn_tiled_kernel(%arg0: i32, %arg1: i32, %arg2: memref<16x128xf32, #tpu.memory_space<vmem>>, %arg3: memref<128x128xf32, #tpu.memory_space<vmem>>, %arg4: memref<1x128xf32, #tpu.memory_space<vmem>>, %arg5: memref<128x128xf32, #tpu.memory_space<vmem>>, %arg6: memref<1x128xf32, #tpu.memory_space<vmem>>, %arg7: memref<16x128xf32, #tpu.memory_space<vmem>>, %arg8: memref<16x128xf32, #tpu.memory_space<vmem>>) attributes {dimension_semantics = [#tpu.dimension_semantics<parallel>, #tpu.dimension_semantics<arbitrary>], iteration_bounds = array<i64: 1, 4>, scalar_prefetch = 0 : i64, scratch_operands = 1 : i64, tpu.core_type = #tpu.core_type<tc>, window_params = [{transform_indices = @transform_0, window_bounds = array<i64: 16, 128>}, {transform_indices = @transform_1, window_bounds = array<i64: 128, 128>}, {transform_indices = @transform_2, window_bounds = array<i64: 1, 128>}, {transform_indices = @transform_3, window_bounds = array<i64: 128, 128>}, {pipeline_mode = #tpu.pipeline_mode<synchronous>, transform_indices = @transform_4, window_bounds = array<i64: 1, 128>}, {transform_indices = @transform_5, window_bounds = array<i64: 16, 128>}]} {
    %c0_i32 = arith.constant 0 : i32
    %0 = arith.cmpi eq, %arg1, %c0_i32 : i32
    %1 = arith.extui %0 : i1 to i32
    %c0_i32_0 = arith.constant 0 : i32
    %2 = arith.cmpi ne, %1, %c0_i32_0 : i32
    scf.if %2 {
      %c0_15 = arith.constant 0 : index
      %c0_16 = arith.constant 0 : index
      %19 = vector.load %arg6[%c0_15, %c0_16] : memref<1x128xf32, #tpu.memory_space<vmem>>, vector<1x128xf32>
      %20 = vector.shape_cast %19 : vector<1x128xf32> to vector<1x128xf32>
      %21 = vector.broadcast %20 : vector<1x128xf32> to vector<16x128xf32>
      %c0_17 = arith.constant 0 : index
      %c0_18 = arith.constant 0 : index
      %22 = vector.load %arg8[%c0_17, %c0_18] : memref<16x128xf32, #tpu.memory_space<vmem>>, vector<16x128xf32>
      tpu.vector_store %arg8[%c0_17, %c0_18], %21 {strides = array<i32>} : memref<16x128xf32, #tpu.memory_space<vmem>>, vector<16x128xf32>,
    } else {
    }
    %c0 = arith.constant 0 : index
    %c0_1 = arith.constant 0 : index
    %3 = vector.load %arg2[%c0, %c0_1] : memref<16x128xf32, #tpu.memory_space<vmem>>, vector<16x128xf32>
    %c0_2 = arith.constant 0 : index
    %c0_3 = arith.constant 0 : index
    %4 = vector.load %arg3[%c0_2, %c0_3] : memref<128x128xf32, #tpu.memory_space<vmem>>, vector<128x128xf32>
    %cst = arith.constant dense<0.000000e+00> : vector<16x128xf32>
    %5 = tpu.matmul %3, %4, %cst {dimension_numbers = #tpu.dot_dimension_numbers<[1], [0], [0], [1], [0, 0, 1, 1], [], []>} : vector<16x128xf32>, vector<128x128xf32>, vector<16x128xf32> -> vector<16x128xf32>
    %c0_4 = arith.constant 0 : index
    %c0_5 = arith.constant 0 : index
    %6 = vector.load %arg4[%c0_4, %c0_5] : memref<1x128xf32, #tpu.memory_space<vmem>>, vector<1x128xf32>
    %7 = vector.broadcast %6 : vector<1x128xf32> to vector<16x128xf32>
    %8 = arith.addf %5, %7 : vector<16x128xf32>
    %cst_6 = arith.constant 0.000000e+00 : f32
    %9 = vector.broadcast %cst_6 : f32 to vector<16x128xf32>
    %10 = arith.maximumf %8, %9 : vector<16x128xf32>
    %c0_7 = arith.constant 0 : index
    %c0_8 = arith.constant 0 : index
    %11 = vector.load %arg8[%c0_7, %c0_8] : memref<16x128xf32, #tpu.memory_space<vmem>>, vector<16x128xf32>
    %c0_9 = arith.constant 0 : index
    %c0_10 = arith.constant 0 : index
    %12 = vector.load %arg5[%c0_9, %c0_10] : memref<128x128xf32, #tpu.memory_space<vmem>>, vector<128x128xf32>
    %cst_11 = arith.constant dense<0.000000e+00> : vector<16x128xf32>
    %13 = tpu.matmul %10, %12, %cst_11 {dimension_numbers = #tpu.dot_dimension_numbers<[1], [0], [0], [1], [0, 0, 1, 1], [], []>} : vector<16x128xf32>, vector<128x128xf32>, vector<16x128xf32> -> vector<16x128xf32>
    %14 = arith.addf %11, %13 : vector<16x128xf32>
    %c0_12 = arith.constant 0 : index
    %c0_13 = arith.constant 0 : index
    %15 = vector.load %arg8[%c0_12, %c0_13] : memref<16x128xf32, #tpu.memory_space<vmem>>, vector<16x128xf32>
    tpu.vector_store %arg8[%c0_12, %c0_13], %14 {strides = array<i32>} : memref<16x128xf32, #tpu.memory_space<vmem>>, vector<16x128xf32>,
    %c3_i32 = arith.constant 3 : i32
    %16 = arith.cmpi eq, %arg1, %c3_i32 : i32
    %17 = arith.extui %16 : i1 to i32
    %c0_i32_14 = arith.constant 0 : i32
    %18 = arith.cmpi ne, %17, %c0_i32_14 : i32
    scf.if %18 {
      %c0_15 = arith.constant 0 : index
      %c0_16 = arith.constant 0 : index
      %19 = vector.load %arg8[%c0_15, %c0_16] : memref<16x128xf32, #tpu.memory_space<vmem>>, vector<16x128xf32>
      %c0_17 = arith.constant 0 : index
      %c0_18 = arith.constant 0 : index
      %20 = vector.load %arg7[%c0_17, %c0_18] : memref<16x128xf32, #tpu.memory_space<vmem>>, vector<16x128xf32>
      tpu.vector_store %arg7[%c0_17, %c0_18], %19 {strides = array<i32>} : memref<16x128xf32, #tpu.memory_space<vmem>>, vector<16x128xf32>,
    } else {
    }
    return
  }
  func.func @transform_0(%arg0: i32, %arg1: i32) -> (i32, i32) {
    %c0_i32 = arith.constant 0 : i32
    %c0_i32_0 = arith.constant 0 : i32
    return %arg0, %c0_i32 : i32, i32
  }
  func.func @transform_1(%arg0: i32, %arg1: i32) -> (i32, i32) {
    %c0_i32 = arith.constant 0 : i32
    %c0_i32_0 = arith.constant 0 : i32
    return %c0_i32, %arg1 : i32, i32
  }
  func.func @transform_2(%arg0: i32, %arg1: i32) -> (i32, i32) {
    %c0_i32 = arith.constant 0 : i32
    %c0_i32_0 = arith.constant 0 : i32
    return %c0_i32, %arg1 : i32, i32
  }
  func.func @transform_3(%arg0: i32, %arg1: i32) -> (i32, i32) {
    %c0_i32 = arith.constant 0 : i32
    %c0_i32_0 = arith.constant 0 : i32
    return %arg1, %c0_i32 : i32, i32
  }
  func.func @transform_4(%arg0: i32, %arg1: i32) -> (i32, i32) {
    %c0_i32 = arith.constant 0 : i32
    %c0_i32_0 = arith.constant 0 : i32
    %c0_i32_1 = arith.constant 0 : i32
    return %c0_i32, %c0_i32_0 : i32, i32
  }
  func.func @transform_5(%arg0: i32, %arg1: i32) -> (i32, i32) {
    %c0_i32 = arith.constant 0 : i32
    %c0_i32_0 = arith.constant 0 : i32
    return %arg0, %c0_i32 : i32, i32
  }
}

</mosaic_0001>

<llo_original>
// kernel: _feed_forward_impl.1
$region0: #{_feed_forward_impl.1}
  #allocation0 [shape = 'u32[]', space=smem, size = 0x4, offset = 0x4, fixed_abs, tag = 'smem constant byte address 0x4 - core index']
  #allocation1 [shape = 'u32[144,128]{1,0:T(1,128)}', space=vmem, size = 0x12000, scoped, tag = 'internal scratch']
  #allocation2 [shape = 'f32[16,128]{1,0:T(8,128)}', space=vmem, size = 0x2000, scoped, tag = 'scratch operand']
  %s0 = inlined_call_operand.hbm [shape: f32[16,128], index: 0, kind: input, shape index: {}]
  %s1 = inlined_call_operand.hbm [shape: f32[128,512], index: 1, kind: input, shape index: {}]
  %s2 = inlined_call_operand.vmem [shape: f32[1,512], index: 2, kind: input, shape index: {}]
  %s3 = inlined_call_operand.hbm [shape: f32[512,128], index: 3, kind: input, shape index: {}]
  %s4 = inlined_call_operand.vmem [shape: f32[1,128], index: 4, kind: input, shape index: {}]
  %s5 = inlined_call_operand.hbm [shape: f32[16,128], index: 5, kind: output, shape index: {}]
  %s6 = sld [smem:[#allocation0]]
  $region73: #{_feed_forward_impl.1} parent=0
    _
  %s8 = ssub.s32 1, %s6
  %s9 = scalar_select 0, %s8, %s6
  $region1: #{_feed_forward_impl.1} parent=0
    #allocation3 [shape = 'u8[8192]{0}', space=vmem, size = 0x2000, scoped, tag = 'input window, operand 0, single buffered']
    #allocation4 [shape = 's32[2]{0}', space=sflag, size = 0x8, scoped, tag = 'scoped memory for _feed_forward_impl.1']
    #allocation5 [shape = 's32[2]{0}', space=sflag, size = 0x8, scoped, tag = 'scoped memory for _feed_forward_impl.1']
    #allocation6 [shape = 'u8[131072]{0}', space=vmem, size = 0x20000, scoped, tag = 'input window, operand 1']
    #allocation7 [shape = 's32[2]{0}', space=sflag, size = 0x8, scoped, tag = 'scoped memory for _feed_forward_impl.1']
    #allocation8 [shape = 'u8[131072]{0}', space=vmem, size = 0x20000, scoped, tag = 'input window, operand 3']
    #allocation9 [shape = 'u8[8192]{0}', space=vmem, size = 0x2000, scoped, tag = 'output window, operand 0, single buffered']
    %10 = vsyncpa [#allocation4], 0
    %11 = vsyncpa [#allocation7], 0
    %s12 = scalar_lea.sflag [#allocation7], 1
    %13 = vsyncpa %s12, 0
    %14 = vsyncpa [#allocation5], 0
    loop: start=0, step=1, limit=6
    $region2: #{_feed_forward_impl.1} parent=1 // loop_pre_header
      _
    $region3: #{_feed_forward_impl.1} parent=1 // loop_header
      %s16 = sphi 0, %s20
      %p17 = scmp.ge.s32.totalorder %s16, 6
      %s23 = sphi 0, %s35
      %s24 = sphi 0, %s31
      %s25 = sphi 0, %s23
      %s26 = sphi 0, %s24
      %s27 = sphi 0, %s25
      %s28 = sphi 0, %s26
      %s38 = sphi 0, %s40
      %s41 = sphi 0, %s38
      %s42 = sphi 0, %s41
      %s58 = sphi 0, %s42
      %s64 = sphi 0, %s66
      %s67 = sphi 0, %s64
      %s68 = sphi 0, %s67
      %s84 = sphi 0, %s68
      %s90 = sphi 0, %s92
      %s93 = sphi 0, %s90
      %s94 = sphi 0, %s93
      %s110 = sphi 0, %s94
      %s116 = sphi 0, %s118
      %s119 = sphi 0, %s116
      %s120 = sphi 0, %s119
      %s136 = sphi 0, %s120
      %s140 = sphi 0, %s140
      %s142 = sphi 0, %s140
      %s143 = sphi 0, %s142
      %s157 = sphi 0, %s143
      %s163 = sphi 0, %s165
      %s166 = sphi 0, %s163
      %s167 = sphi 0, %s166
      %s183 = sphi 0, %s167
    $region4: #{_feed_forward_impl.1} parent=1 // loop_header_branch
      %19 = sbr.rel (%p17) target = $region8
    $region5: #{_feed_forward_impl.1} parent=1 // loop_body
      %s21 = ssub.s32 %s16, 1
      %s22 = ssub.s32 %s16, 2
      %s29 = sadd.s32 1, %s24
      %p30 = scmp.ge.s32.totalorder %s29, 4
      %s31 = scalar_select %p30, 0, %s29
      %s32 = sadd.s32 1, %s23
      %s33 = scalar_select %p30, %s32, %s23
      %p34 = scmp.ge.s32.totalorder %s33, 1
      %s35 = scalar_select %p34, 0, %s33
      %s36 = ssub.s32 %s23, %s35
      %p37 = scmp.eq.s32.totalorder %s36, 0
      %s39 = sadd.s32 %s38, 1
      %s40 = scalar_select %p37, %s38, %s39
      %p43 = pneg %p37
      %p44 = scmp.eq.s32.totalorder %s16, 3
      %p45 = por %p43, %p44
      %p46 = scmp.ne.s32.totalorder %s38, %s41
      %p47 = scmp.eq.s32.totalorder %s16, 0
      %p48 = por %p46, %p47
      %p49 = scmp.ne.s32.totalorder %s38, %s41
      %p50 = scmp.eq.s32.totalorder %s21, 3
      %p51 = por %p49, %p50
      %p52 = scmp.ne.s32.totalorder %s41, %s42
      %p53 = scmp.eq.s32.totalorder %s21, 0
      %p54 = por %p52, %p53
      %p55 = scmp.ne.s32.totalorder %s41, %s42
      %p56 = scmp.eq.s32.totalorder %s22, 3
      %p57 = por %p55, %p56
      %p59 = scmp.ne.s32.totalorder %s42, %s58
      %p60 = scmp.eq.s32.totalorder %s22, 0
      %p61 = por %p59, %p60
      %s62 = ssub.s32 %s24, %s31
      %p63 = scmp.eq.s32.totalorder %s62, 0
      %s65 = sadd.s32 %s64, 1
      %s66 = scalar_select %p63, %s64, %s65
      %p69 = pneg %p63
      %p70 = scmp.eq.s32.totalorder %s16, 3
      %p71 = por %p69, %p70
      %p72 = scmp.ne.s32.totalorder %s64, %s67
      %p73 = scmp.eq.s32.totalorder %s16, 0
      %p74 = por %p72, %p73
      %p75 = scmp.ne.s32.totalorder %s64, %s67
      %p76 = scmp.eq.s32.totalorder %s21, 3
      %p77 = por %p75, %p76
      %p78 = scmp.ne.s32.totalorder %s67, %s68
      %p79 = scmp.eq.s32.totalorder %s21, 0
      %p80 = por %p78, %p79
      %p81 = scmp.ne.s32.totalorder %s67, %s68
      %p82 = scmp.eq.s32.totalorder %s22, 3
      %p83 = por %p81, %p82
      %p85 = scmp.ne.s32.totalorder %s68, %s84
      %p86 = scmp.eq.s32.totalorder %s22, 0
      %p87 = por %p85, %p86
      %s88 = ssub.s32 %s24, %s31
      %p89 = scmp.eq.s32.totalorder %s88, 0
      %s91 = sadd.s32 %s90, 1
      %s92 = scalar_select %p89, %s90, %s91
      %p95 = pneg %p89
      %p96 = scmp.eq.s32.totalorder %s16, 3
      %p97 = por %p95, %p96
      %p98 = scmp.ne.s32.totalorder %s90, %s93
      %p99 = scmp.eq.s32.totalorder %s16, 0
      %p100 = por %p98, %p99
      %p101 = scmp.ne.s32.totalorder %s90, %s93
      %p102 = scmp.eq.s32.totalorder %s21, 3
      %p103 = por %p101, %p102
      %p104 = scmp.ne.s32.totalorder %s93, %s94
      %p105 = scmp.eq.s32.totalorder %s21, 0
      %p106 = por %p104, %p105
      %p107 = scmp.ne.s32.totalorder %s93, %s94
      %p108 = scmp.eq.s32.totalorder %s22, 3
      %p109 = por %p107, %p108
      %p111 = scmp.ne.s32.totalorder %s94, %s110
      %p112 = scmp.eq.s32.totalorder %s22, 0
      %p113 = por %p111, %p112
      %s114 = ssub.s32 %s24, %s31
      %p115 = scmp.eq.s32.totalorder %s114, 0
      %s117 = sadd.s32 %s116, 1
      %s118 = scalar_select %p115, %s116, %s117
      %p121 = pneg %p115
      %p122 = scmp.eq.s32.totalorder %s16, 3
      %p123 = por %p121, %p122
      %p124 = scmp.ne.s32.totalorder %s116, %s119
      %p125 = scmp.eq.s32.totalorder %s16, 0
      %p126 = por %p124, %p125
      %p127 = scmp.ne.s32.totalorder %s116, %s119
      %p128 = scmp.eq.s32.totalorder %s21, 3
      %p129 = por %p127, %p128
      %p130 = scmp.ne.s32.totalorder %s119, %s120
      %p131 = scmp.eq.s32.totalorder %s21, 0
      %p132 = por %p130, %p131
      %p133 = scmp.ne.s32.totalorder %s119, %s120
      %p134 = scmp.eq.s32.totalorder %s22, 3
      %p135 = por %p133, %p134
      %p137 = scmp.ne.s32.totalorder %s120, %s136
      %p138 = scmp.eq.s32.totalorder %s22, 0
      %p139 = por %p137, %p138
      %s141 = sadd.s32 %s140, 1
      %p144 = scmp.eq.s32.totalorder %s16, 3
      %p145 = scmp.ne.s32.totalorder %s140, %s142
      %p146 = scmp.eq.s32.totalorder %s16, 0
      %p147 = por %p145, %p146
      %p148 = scmp.ne.s32.totalorder %s140, %s142
      %p149 = scmp.eq.s32.totalorder %s21, 3
      %p150 = por %p148, %p149
      %p151 = scmp.ne.s32.totalorder %s142, %s143
      %p152 = scmp.eq.s32.totalorder %s21, 0
      %p153 = por %p151, %p152
      %p154 = scmp.ne.s32.totalorder %s142, %s143
      %p155 = scmp.eq.s32.totalorder %s22, 3
      %p156 = por %p154, %p155
      %p158 = scmp.ne.s32.totalorder %s143, %s157
      %p159 = scmp.eq.s32.totalorder %s22, 0
      %p160 = por %p158, %p159
      %s161 = ssub.s32 %s23, %s35
      %p162 = scmp.eq.s32.totalorder %s161, 0
      %s164 = sadd.s32 %s163, 1
      %s165 = scalar_select %p162, %s163, %s164
      %p168 = pneg %p162
      %p169 = scmp.eq.s32.totalorder %s16, 3
      %p170 = por %p168, %p169
      %p171 = scmp.ne.s32.totalorder %s163, %s166
      %p172 = scmp.eq.s32.totalorder %s16, 0
      %p173 = por %p171, %p172
      %p174 = scmp.ne.s32.totalorder %s163, %s166
      %p175 = scmp.eq.s32.totalorder %s21, 3
      %p176 = por %p174, %p175
      %p177 = scmp.ne.s32.totalorder %s166, %s167
      %p178 = scmp.eq.s32.totalorder %s21, 0
      %p179 = por %p177, %p178
      %p180 = scmp.ne.s32.totalorder %s166, %s167
      %p181 = scmp.eq.s32.totalorder %s22, 3
      %p182 = por %p180, %p181
      %p184 = scmp.ne.s32.totalorder %s167, %s183
      %p185 = scmp.eq.s32.totalorder %s22, 0
      %p186 = por %p184, %p185
      %p187 = scmp.le.s32.totalorder 1, %s16
      %p188 = scmp.lt.s32.totalorder %s16, 5
      %p189 = pnand %p187, %p188
      %p190 = pneg %p189
      // Predicated region
      $region9: #{_feed_forward_impl.1} parent=5 // pred_check
        _
      $region10: #{_feed_forward_impl.1} parent=5 // pred_check_branch
        %192 = sbr.rel (%p189) target = $region12
      $region11: #{_feed_forward_impl.1} parent=5 // pred_region
        %s193 = ssub.s32 %s16, 1
        // Predicated region
        $region13: #{_feed_forward_impl.1} parent=11 // pred_check
          %p194 = pneg %p54
        $region14: #{_feed_forward_impl.1} parent=11 // pred_check_branch
          %196 = sbr.rel (%p194) target = $region16
        $region15: #{_feed_forward_impl.1} parent=11 // pred_region
          %s197 = smul.u32 2, %s25
          %s199 = ssub.s32 256, 256
          %200 = vsyncadd [#allocation4], %s199
          %s201 = smul.addr %s197, 128
          %s202 = scalar_lea.hbm %s0, %s201
          %s203 = sshll.u32 [#allocation3], 4
          %s204 = int_to_ptr.vmem [resolvable:$true] %s203
          %209 = dma.hbm_to_vmem [thread:$0]  %s202, 256, %s204, [#allocation4], 128, 128, 8
        $region16: #{_feed_forward_impl.1} parent=11 // pred_fallthru
          _
        // Predicated region
        $region17: #{_feed_forward_impl.1} parent=11 // pred_check
          %p210 = pneg %p153
        $region18: #{_feed_forward_impl.1} parent=11 // pred_check_branch
          %212 = sbr.rel (%p210) target = $region20
        $region19: #{_feed_forward_impl.1} parent=11 // pred_region
          _
        $region20: #{_feed_forward_impl.1} parent=11 // pred_fallthru
          _
      $region12: #{_feed_forward_impl.1} parent=5 // pred_fallthru
        _
      %p213 = scmp.lt.s32.totalorder %s16, 4
      // Predicated region
      $region21: #{_feed_forward_impl.1} parent=5 // pred_check
        %p214 = pneg %p213
      $region22: #{_feed_forward_impl.1} parent=5 // pred_check_branch
        %216 = sbr.rel (%p214) target = $region24
      $region23: #{_feed_forward_impl.1} parent=5 // pred_region
        // Predicated region
        $region25: #{_feed_forward_impl.1} parent=23 // pred_check
          %p217 = pneg %p74
        $region26: #{_feed_forward_impl.1} parent=23 // pred_check_branch
          %219 = sbr.rel (%p217) target = $region28
        $region27: #{_feed_forward_impl.1} parent=23 // pred_region
          %s220 = sand.u32 %s16, 1
          %s221 = scalar_lea.sflag [#allocation7], %s220
          %s222 = sand.u32 %s64, 1
          %s223 = smul.addr %s222, 128
          %s224 = scalar_lea.vmem [#allocation6], %s223
          %s226 = ssub.s32 2048, 2048
          %227 = vsyncadd %s221, %s226
          %s228 = smul.addr %s24, 128
          %s229 = scalar_lea.hbm %s1, %s228
          %s230 = sshll.u32 %s224, 4
          %s231 = int_to_ptr.vmem [resolvable:$true] %s230
          %236 = dma.hbm_to_vmem [thread:$0]  %s229, 2048, %s231, %s221, 512, 128, 8
        $region28: #{_feed_forward_impl.1} parent=23 // pred_fallthru
          _
        // Predicated region
        $region29: #{_feed_forward_impl.1} parent=23 // pred_check
          %p237 = pneg %p100
        $region30: #{_feed_forward_impl.1} parent=23 // pred_check_branch
          %239 = sbr.rel (%p237) target = $region32
        $region31: #{_feed_forward_impl.1} parent=23 // pred_region
          %p240 = scmp.lt.s32.totalorder %s24, 3
          %s241 = scalar_select %p240, %s24, 3
          %s242 = scalar_lea.vmem %s2, %s241
        $region32: #{_feed_forward_impl.1} parent=23 // pred_fallthru
          _
        // Predicated region
        $region33: #{_feed_forward_impl.1} parent=23 // pred_check
          %p243 = pneg %p126
        $region34: #{_feed_forward_impl.1} parent=23 // pred_check_branch
          %245 = sbr.rel (%p243) target = $region36
        $region35: #{_feed_forward_impl.1} parent=23 // pred_region
          %s246 = sand.u32 %s16, 1
          %s247 = scalar_lea.sflag [#allocation7], %s246
          %s248 = sand.u32 %s116, 1
          %s249 = smul.addr %s248, 128
          %s250 = scalar_lea.vmem [#allocation8], %s249
          %s251 = smul.u32 16, %s24
          %s253 = ssub.s32 2048, 2048
          %254 = vsyncadd %s247, %s253
          %s255 = smul.addr %s251, 128
          %s256 = scalar_lea.hbm %s3, %s255
          %s257 = sshll.u32 %s250, 4
          %s258 = int_to_ptr.vmem [resolvable:$true] %s257
          %263 = dma.hbm_to_vmem [thread:$0]  %s256, 2048, %s258, %s247, 128, 128, 8
        $region36: #{_feed_forward_impl.1} parent=23 // pred_fallthru
          _
      $region24: #{_feed_forward_impl.1} parent=5 // pred_fallthru
        _
      %p264 = scmp.le.s32.totalorder 1, %s16
      %p265 = scmp.lt.s32.totalorder %s16, 5
      %p266 = pnand %p264, %p265
      %p267 = pneg %p266
      // Predicated region
      $region37: #{_feed_forward_impl.1} parent=5 // pred_check
        _
      $region38: #{_feed_forward_impl.1} parent=5 // pred_check_branch
        %269 = sbr.rel (%p266) target = $region40
      $region39: #{_feed_forward_impl.1} parent=5 // pred_region
        %s270 = ssub.s32 %s16, 1
        // Predicated region
        $region41: #{_feed_forward_impl.1} parent=39 // pred_check
          %p271 = pneg %p54
        $region42: #{_feed_forward_impl.1} parent=39 // pred_check_branch
          %273 = sbr.rel (%p271) target = $region44
        $region43: #{_feed_forward_impl.1} parent=39 // pred_region
          %274 = dma.done [#allocation4], 256
        $region44: #{_feed_forward_impl.1} parent=39 // pred_fallthru
          _
        %s275 = sand.u32 %s21, 1
        %s276 = scalar_lea.sflag [#allocation7], %s275
        %s277 = sand.u32 %s67, 1
        %s278 = smul.addr %s277, 128
        %s279 = scalar_lea.vmem [#allocation6], %s278
        // Predicated region
        $region45: #{_feed_forward_impl.1} parent=39 // pred_check
          %p280 = pneg %p80
        $region46: #{_feed_forward_impl.1} parent=39 // pred_check_branch
          %282 = sbr.rel (%p280) target = $region48
        $region47: #{_feed_forward_impl.1} parent=39 // pred_region
          %283 = dma.done %s276, 2048
        $region48: #{_feed_forward_impl.1} parent=39 // pred_fallthru
          _
        %s284 = sand.u32 %s21, 1
        %s285 = scalar_lea.sflag [#allocation7], %s284
        %s286 = sand.u32 %s119, 1
        %s287 = smul.addr %s286, 128
        %s288 = scalar_lea.vmem [#allocation8], %s287
        // Predicated region
        $region49: #{_feed_forward_impl.1} parent=39 // pred_check
          %p289 = pneg %p132
        $region50: #{_feed_forward_impl.1} parent=39 // pred_check_branch
          %291 = sbr.rel (%p289) target = $region52
        $region51: #{_feed_forward_impl.1} parent=39 // pred_region
          %292 = dma.done %s285, 2048
        $region52: #{_feed_forward_impl.1} parent=39 // pred_fallthru
          _
        %p293 = pneg %p54
        %p294 = pneg %p51
        %s295 = sand.u32 %s21, 1
        %s296 = scalar_lea.sflag [#allocation7], %s295
        %s297 = sand.u32 %s67, 1
        %s298 = smul.addr %s297, 128
        %s299 = scalar_lea.vmem [#allocation6], %s298
        %p300 = pneg %p80
        %p301 = pneg %p77
        %p302 = scmp.lt.s32.totalorder %s26, 3
        %s303 = scalar_select %p302, %s26, 3
        %s304 = scalar_lea.vmem %s2, %s303
        %p305 = pneg %p106
        %p306 = pneg %p103
        %s307 = sand.u32 %s21, 1
        %s308 = scalar_lea.sflag [#allocation7], %s307
        %s309 = sand.u32 %s119, 1
        %s310 = smul.addr %s309, 128
        %s311 = scalar_lea.vmem [#allocation8], %s310
        %p312 = pneg %p132
        %p313 = pneg %p129
        %p314 = pneg %p153
        %p315 = pneg %p150
        %p316 = pneg %p179
        %p317 = pneg %p176
        %s318 = smul.u32 2, %s25
        %p319 = scmp.lt.s32.totalorder %s26, 3
        %s320 = scalar_select %p319, %s26, 3
        %s321 = scalar_lea.vmem %s2, %s320
        %s322 = smul.u32 16, %s26
        %s323 = smul.u32 2, %s25
        %p324 = scmp.eq.s32.totalorder %s26, 0
        // Predicated region
        $region53: #{_feed_forward_impl.1} parent=39 // pred_check
          %p325 = pneg %p324
        $region54: #{_feed_forward_impl.1} parent=39 // pred_check_branch
          %327 = sbr.rel (%p325) target = $region56
        $region55: #{_feed_forward_impl.1} parent=39 // pred_region
          %v328 = vld [vmem:[%s4] sm:$0x1]
          %v330 = vlaneseq
          %v331 = vshrl.u32 %v330, 7
          %v332 = vsub.s32 0, %v331
          %v333 = vrot.slane %v328, %v332
          %335 = vst [vmem:[#allocation2] sm:$0xff] %v333
          %336 = vst [vmem:[#allocation2 + $0x8] sm:$0xff] %v333
        $region56: #{_feed_forward_impl.1} parent=39 // pred_fallthru
          _
        %v337 = vld [vmem:[#allocation3] sm:$0xff]
        %v338 = vld [vmem:[#allocation3 + $0x8] sm:$0xff]
        %v339 = vld [vmem:[%s279] sm:$0xff]
        %v340 = vld [vmem:[%s279 + $0x8] sm:$0xff]
        %v341 = vld [vmem:[%s279 + $0x10] sm:$0xff]
        %v342 = vld [vmem:[%s279 + $0x18] sm:$0xff]
        %v343 = vld [vmem:[%s279 + $0x20] sm:$0xff]
        %v344 = vld [vmem:[%s279 + $0x28] sm:$0xff]
        %v345 = vld [vmem:[%s279 + $0x30] sm:$0xff]
        %v346 = vld [vmem:[%s279 + $0x38] sm:$0xff]
        %v347 = vld [vmem:[%s279 + $0x40] sm:$0xff]
        %v348 = vld [vmem:[%s279 + $0x48] sm:$0xff]
        %v349 = vld [vmem:[%s279 + $0x50] sm:$0xff]
        %v350 = vld [vmem:[%s279 + $0x58] sm:$0xff]
        %v351 = vld [vmem:[%s279 + $0x60] sm:$0xff]
        %v352 = vld [vmem:[%s279 + $0x68] sm:$0xff]
        %v353 = vld [vmem:[%s279 + $0x70] sm:$0xff]
        %v354 = vld [vmem:[%s279 + $0x78] sm:$0xff]
        %v355 = vld [vmem:[%s321] sm:$0x1]
        %v357 = vlaneseq
        %v358 = vshrl.u32 %v357, 7
        %v359 = vsub.s32 0, %v358
        %v360 = vrot.slane %v355, %v359
        %362 = vmatprep.subr.mxu0 0.0
        %363 = vmatpush1.msra.mxu0 %v354
        %364 = vmatprep.subr.mxu0 0.0
        %365 = vmatpush1.msra.mxu0 %v353
        %366 = vmatprep.subr.mxu0 0.0
        %367 = vmatpush1.msra.mxu0 %v352
        %368 = vmatprep.subr.mxu0 0.0
        %369 = vmatpush1.msra.mxu0 %v351
        %370 = vmatprep.subr.mxu0 0.0
        %371 = vmatpush1.msra.mxu0 %v350
        %372 = vmatprep.subr.mxu0 0.0
        %373 = vmatpush1.msra.mxu0 %v349
        %374 = vmatprep.subr.mxu0 0.0
        %375 = vmatpush1.msra.mxu0 %v348
        %376 = vmatprep.subr.mxu0 0.0
        %377 = vmatpush1.msra.mxu0 %v347
        %378 = vmatprep.subr.mxu0 0.0
        %379 = vmatpush1.msra.mxu0 %v346
        %380 = vmatprep.subr.mxu0 0.0
        %381 = vmatpush1.msra.mxu0 %v345
        %382 = vmatprep.subr.mxu0 0.0
        %383 = vmatpush1.msra.mxu0 %v344
        %384 = vmatprep.subr.mxu0 0.0
        %385 = vmatpush1.msra.mxu0 %v343
        %386 = vmatprep.subr.mxu0 0.0
        %387 = vmatpush1.msra.mxu0 %v342
        %388 = vmatprep.subr.mxu0 0.0
        %389 = vmatpush1.msra.mxu0 %v341
        %390 = vmatprep.subr.mxu0 0.0
        %391 = vmatpush1.msra.mxu0 %v340
        %392 = vmatprep.subr.mxu0 0.0
        %393 = vmatpush1.msra.mxu0 %v339
        %394 = vmatprep.subr.mxu0 0.0
        %395 = vmatpush2.msra.mxu0 0.0
        %396 = vmatprep.subr.mxu0 0.0
        %397 = vmatpush2.msra.mxu0 0.0
        %398 = vmatprep.subr.mxu0 0.0
        %399 = vmatpush2.msra.mxu0 0.0
        %400 = vmatprep.subr.mxu0 0.0
        %401 = vmatpush2.msra.mxu0 0.0
        %402 = vmatprep.subr.mxu0 0.0
        %403 = vmatpush2.msra.mxu0 0.0
        %404 = vmatprep.subr.mxu0 0.0
        %405 = vmatpush2.msra.mxu0 0.0
        %406 = vmatprep.subr.mxu0 0.0
        %407 = vmatpush2.msra.mxu0 0.0
        %408 = vmatprep.subr.mxu0 0.0
        %409 = vmatpush2.msra.mxu0 0.0
        %410 = vmatprep.subr.mxu0 0.0
        %411 = vmatpush2.msra.mxu0 0.0
        %412 = vmatprep.subr.mxu0 0.0
        %413 = vmatpush2.msra.mxu0 0.0
        %414 = vmatprep.subr.mxu0 0.0
        %415 = vmatpush2.msra.mxu0 0.0
        %416 = vmatprep.subr.mxu0 0.0
        %417 = vmatpush2.msra.mxu0 0.0
        %418 = vmatprep.subr.mxu0 0.0
        %419 = vmatpush2.msra.mxu0 0.0
        %420 = vmatprep.subr.mxu0 0.0
        %421 = vmatpush2.msra.mxu0 0.0
        %422 = vmatprep.subr.mxu0 0.0
        %423 = vmatpush2.msra.mxu0 0.0
        %424 = vmatprep.subr.mxu0 0.0
        %425 = vmatpush2.msra.mxu0 0.0
        %426 = vmatprep.mubr.f32.mxu0 0.0
        %427 = vmatmul.mubr.f32.gmra.mxu0 %v337
        %v428 = vpop.f32.mrf.mxu0
        %v429 = vadd.f32 %v360, %v428
        %v430 = vpop.f32.mrf.mxu0
        %431 = vmatprep.mubr.f32.mxu0 0.0
        %432 = vmatmul.mubr.f32.gmra.mxu0 %v338
        %v433 = vpop.f32.mrf.mxu0
        %v434 = vadd.f32 %v360, %v433
        %v435 = vpop.f32.mrf.mxu0
        %436 = vdwg.mxu0
        %v437 = vmax.f32 %v429, 0.0
        %v438 = vmax.f32 %v434, 0.0
        %v439 = vld [vmem:[#allocation2] sm:$0xff]
        %v440 = vld [vmem:[#allocation2 + $0x8] sm:$0xff]
        %v441 = vld [vmem:[%s288] sm:$0xff]
        %v442 = vld [vmem:[%s288 + $0x8] sm:$0xff]
        %v443 = vld [vmem:[%s288 + $0x10] sm:$0xff]
        %v444 = vld [vmem:[%s288 + $0x18] sm:$0xff]
        %v445 = vld [vmem:[%s288 + $0x20] sm:$0xff]
        %v446 = vld [vmem:[%s288 + $0x28] sm:$0xff]
        %v447 = vld [vmem:[%s288 + $0x30] sm:$0xff]
        %v448 = vld [vmem:[%s288 + $0x38] sm:$0xff]
        %v449 = vld [vmem:[%s288 + $0x40] sm:$0xff]
        %v450 = vld [vmem:[%s288 + $0x48] sm:$0xff]
        %v451 = vld [vmem:[%s288 + $0x50] sm:$0xff]
        %v452 = vld [vmem:[%s288 + $0x58] sm:$0xff]
        %v453 = vld [vmem:[%s288 + $0x60] sm:$0xff]
        %v454 = vld [vmem:[%s288 + $0x68] sm:$0xff]
        %v455 = vld [vmem:[%s288 + $0x70] sm:$0xff]
        %v456 = vld [vmem:[%s288 + $0x78] sm:$0xff]
        %457 = vmatprep.subr.mxu0 0.0
        %458 = vmatpush1.msra.mxu0 %v456
        %459 = vmatprep.subr.mxu0 0.0
        %460 = vmatpush1.msra.mxu0 %v455
        %461 = vmatprep.subr.mxu0 0.0
        %462 = vmatpush1.msra.mxu0 %v454
        %463 = vmatprep.subr.mxu0 0.0
        %464 = vmatpush1.msra.mxu0 %v453
        %465 = vmatprep.subr.mxu0 0.0
        %466 = vmatpush1.msra.mxu0 %v452
        %467 = vmatprep.subr.mxu0 0.0
        %468 = vmatpush1.msra.mxu0 %v451
        %469 = vmatprep.subr.mxu0 0.0
        %470 = vmatpush1.msra.mxu0 %v450
        %471 = vmatprep.subr.mxu0 0.0
        %472 = vmatpush1.msra.mxu0 %v449
        %473 = vmatprep.subr.mxu0 0.0
        %474 = vmatpush1.msra.mxu0 %v448
        %475 = vmatprep.subr.mxu0 0.0
        %476 = vmatpush1.msra.mxu0 %v447
        %477 = vmatprep.subr.mxu0 0.0
        %478 = vmatpush1.msra.mxu0 %v446
        %479 = vmatprep.subr.mxu0 0.0
        %480 = vmatpush1.msra.mxu0 %v445
        %481 = vmatprep.subr.mxu0 0.0
        %482 = vmatpush1.msra.mxu0 %v444
        %483 = vmatprep.subr.mxu0 0.0
        %484 = vmatpush1.msra.mxu0 %v443
        %485 = vmatprep.subr.mxu0 0.0
        %486 = vmatpush1.msra.mxu0 %v442
        %487 = vmatprep.subr.mxu0 0.0
        %488 = vmatpush1.msra.mxu0 %v441
        %489 = vmatprep.subr.mxu0 0.0
        %490 = vmatpush2.msra.mxu0 0.0
        %491 = vmatprep.subr.mxu0 0.0
        %492 = vmatpush2.msra.mxu0 0.0
        %493 = vmatprep.subr.mxu0 0.0
        %494 = vmatpush2.msra.mxu0 0.0
        %495 = vmatprep.subr.mxu0 0.0
        %496 = vmatpush2.msra.mxu0 0.0
        %497 = vmatprep.subr.mxu0 0.0
        %498 = vmatpush2.msra.mxu0 0.0
        %499 = vmatprep.subr.mxu0 0.0
        %500 = vmatpush2.msra.mxu0 0.0
        %501 = vmatprep.subr.mxu0 0.0
        %502 = vmatpush2.msra.mxu0 0.0
        %503 = vmatprep.subr.mxu0 0.0
        %504 = vmatpush2.msra.mxu0 0.0
        %505 = vmatprep.subr.mxu0 0.0
        %506 = vmatpush2.msra.mxu0 0.0
        %507 = vmatprep.subr.mxu0 0.0
        %508 = vmatpush2.msra.mxu0 0.0
        %509 = vmatprep.subr.mxu0 0.0
        %510 = vmatpush2.msra.mxu0 0.0
        %511 = vmatprep.subr.mxu0 0.0
        %512 = vmatpush2.msra.mxu0 0.0
        %513 = vmatprep.subr.mxu0 0.0
        %514 = vmatpush2.msra.mxu0 0.0
        %515 = vmatprep.subr.mxu0 0.0
        %516 = vmatpush2.msra.mxu0 0.0
        %517 = vmatprep.subr.mxu0 0.0
        %518 = vmatpush2.msra.mxu0 0.0
        %519 = vmatprep.subr.mxu0 0.0
        %520 = vmatpush2.msra.mxu0 0.0
        %521 = vmatprep.mubr.f32.mxu0 0.0
        %522 = vmatmul.mubr.f32.gmra.mxu0 %v437
        %v523 = vpop.f32.mrf.mxu0
        %v524 = vadd.f32 0.0, %v523
        %v525 = vpop.f32.mrf.mxu0
        %526 = vmatprep.mubr.f32.mxu0 0.0
        %527 = vmatmul.mubr.f32.gmra.mxu0 %v438
        %v528 = vpop.f32.mrf.mxu0
        %v529 = vadd.f32 0.0, %v528
        %v530 = vpop.f32.mrf.mxu0
        %531 = vdwg.mxu0
        %v532 = vadd.f32 %v439, %v524
        %v533 = vadd.f32 %v440, %v529
        %534 = vst [vmem:[#allocation2] sm:$0xff] %v532
        %535 = vst [vmem:[#allocation2 + $0x8] sm:$0xff] %v533
        %p536 = scmp.eq.s32.totalorder %s26, 3
        // Predicated region
        $region57: #{_feed_forward_impl.1} parent=39 // pred_check
          %p537 = pneg %p536
        $region58: #{_feed_forward_impl.1} parent=39 // pred_check_branch
          %539 = sbr.rel (%p537) target = $region60
        $region59: #{_feed_forward_impl.1} parent=39 // pred_region
          %v540 = vld [vmem:[#allocation2] sm:$0xff]
          %v541 = vld [vmem:[#allocation2 + $0x8] sm:$0xff]
          %542 = vst [vmem:[#allocation9] sm:$0xff] %v540
          %543 = vst [vmem:[#allocation9 + $0x8] sm:$0xff] %v541
        $region60: #{_feed_forward_impl.1} parent=39 // pred_fallthru
          _
        // Predicated region
        $region61: #{_feed_forward_impl.1} parent=39 // pred_check
          %p544 = pneg %p176
        $region62: #{_feed_forward_impl.1} parent=39 // pred_check_branch
          %546 = sbr.rel (%p544) target = $region64
        $region63: #{_feed_forward_impl.1} parent=39 // pred_region
          %s547 = smul.u32 2, %s25
          %s549 = ssub.s32 256, 256
          %550 = vsyncadd [#allocation5], %s549
          %s551 = smul.addr %s547, 128
          %s552 = scalar_lea.hbm %s5, %s551
          %s553 = sshll.u32 [#allocation9], 4
          %s554 = int_to_ptr.vmem [resolvable:$true] %s553
          %559 = dma.vmem_to_hbm [thread:$0]  %s554, 256, %s552, [#allocation5], 128, 128, 8
        $region64: #{_feed_forward_impl.1} parent=39 // pred_fallthru
          _
        // Predicated region
        $region65: #{_feed_forward_impl.1} parent=39 // pred_check
          %p560 = pneg %p176
        $region66: #{_feed_forward_impl.1} parent=39 // pred_check_branch
          %562 = sbr.rel (%p560) target = $region68
        $region67: #{_feed_forward_impl.1} parent=39 // pred_region
          %563 = dma.done [#allocation5], 256
        $region68: #{_feed_forward_impl.1} parent=39 // pred_fallthru
          _
      $region40: #{_feed_forward_impl.1} parent=5 // pred_fallthru
        _
      %p564 = scmp.le.s32.totalorder 2, %s16
      // Predicated region
      $region69: #{_feed_forward_impl.1} parent=5 // pred_check
        %p565 = pneg %p564
      $region70: #{_feed_forward_impl.1} parent=5 // pred_check_branch
        %567 = sbr.rel (%p565) target = $region72
      $region71: #{_feed_forward_impl.1} parent=5 // pred_region
        %s568 = ssub.s32 %s16, 2
      $region72: #{_feed_forward_impl.1} parent=5 // pred_fallthru
        _
    $region6: #{_feed_forward_impl.1} parent=1 // loop_footer
      %s20 = sadd.s32 1, %s16
    $region7: #{_feed_forward_impl.1} parent=1 // loop_footer_branch
      %15 = sbr.rel target = $region3
    $region8: #{_feed_forward_impl.1} parent=1 // loop_exit
      _
    %569 = vsyncpa [#allocation4], 1
    %s570 = scalar_lea.sflag [#allocation4], 1
    %571 = vsyncpa %s570, 1
    %572 = vsyncpa [#allocation7], 1
    %s573 = scalar_lea.sflag [#allocation7], 1
    %574 = vsyncpa %s573, 1
    %575 = vsyncpa [#allocation5], 1
    %s576 = scalar_lea.sflag [#allocation5], 1
    %577 = vsyncpa %s576, 1

</llo_original>
